<compile_context>
chip_gen: v6e
topology: v6e:2x2x1
jax: 0.10.0
libtpu: 0.0.40
codegen_flags: <defaults>
</compile_context>

<pallas_src>
import functools
from collections import OrderedDict

import jax
import jax.numpy as jnp
from jax.experimental import pallas as pl
from jax.experimental.pallas import tpu as pltpu


# ---------------------------------------------------------------------------
# Generation-aware VMEM sizing
# ---------------------------------------------------------------------------
def _vmem_budget_and_limit():
    """Return (footprint budget, scoped-vmem limit) sized from the chip."""
    try:
        cap = int(pltpu.get_tpu_info().vmem_capacity_bytes)
    except Exception:                      # interpret mode / older runtimes
        cap = 64 * 1024 * 1024             # conservative: v7x per-core VMEM
    cap = max(cap, 32 * 1024 * 1024)
    budget = (cap * 5) // 8                # 40 MiB on v7x, 80 MiB on v5e/v6e
    limit = min((cap * 3) // 4, 100 * 1024 * 1024)  # 48 MiB / 96 MiB
    return int(budget), int(limit)


# ---------------------------------------------------------------------------
# Kernel 1: fused task loss (CE + masked L1 bbox) + multi-teacher logit KD.
#   Lane-dense layouts: logits [C, N], labels [1, N], boxes [4, N].
#   grid = (lane tiles over N = B*Q,), per-block partials -> (8,128) block.
# ---------------------------------------------------------------------------
def _student_losses_kernel(*refs, n_rows, n_teachers, no_object, temperature,
                           tile_cols):
    s_ref, lab_ref, bp_ref, bt_ref = refs[:4]
    t_refs = refs[4:4 + n_teachers]
    out_ref = refs[4 + n_teachers]          # VMEM (8, 128) partial-sum block

    r = pl.program_id(0)

    # Single validity mask (lane layout) reused by CE, KD and the bbox loss.
    col = r * tile_cols + jax.lax.broadcasted_iota(jnp.int32, (1, tile_cols), 1)
    valid = col < n_rows                                         # [1, tile]

    # ---- student log-softmax, lane-dense [C, tile]: computed ONCE -----------
    s = jnp.where(valid, s_ref[...].astype(jnp.float32), 0.0)    # [C, tile]
    m = jnp.max(s, axis=0, keepdims=True)
    e_s = jnp.exp(s - m)
    logp = (s - m) - jnp.log(jnp.sum(e_s, axis=0, keepdims=True))

    # ---- cross-entropy with implicit one-hot (class iota on sublane axis) ---
    labels = lab_ref[...]                                        # [1, tile] i32
    cls = jax.lax.broadcasted_iota(jnp.int32, s.shape, 0)
    picked = jnp.sum(jnp.where(cls == labels, logp, 0.0),
                     axis=0, keepdims=True)                      # [1, tile]
    ce_sum = jnp.sum(jnp.where(valid, -picked, 0.0))

    # ---- KD: temperature-scaled student log-softmax (skipped when T == 1) ---
    inv_t = 1.0 / temperature
    if temperature == 1.0:
        logp_s_t = logp
    else:
        s_t = s * inv_t
        m_t = jnp.max(s_t, axis=0, keepdims=True)
        e_st = jnp.exp(s_t - m_t)
        logp_s_t = (s_t - m_t) - jnp.log(jnp.sum(e_st, axis=0, keepdims=True))

    kd_sum = jnp.zeros((), jnp.float32)
    for t_ref in t_refs:
        t = jnp.where(valid, t_ref[...].astype(jnp.float32), 0.0) * inv_t
        m_2 = jnp.max(t, axis=0, keepdims=True)
        e_t = jnp.exp(t - m_2)                        # single exp per teacher
        z_t = jnp.sum(e_t, axis=0, keepdims=True)
        logp_t = (t - m_2) - jnp.log(z_t)
        p_t = e_t * pl.reciprocal(z_t, approx=True)   # reuse e_t: no 2nd exp
        kl = jnp.sum(p_t * (logp_t - logp_s_t), axis=0, keepdims=True)
        kd_sum = kd_sum + jnp.sum(jnp.where(valid, kl, 0.0))

    # ---- masked L1 bbox loss, lane-dense [4, tile] layout --------------------
    matched = jnp.logical_and(valid, labels != no_object)        # [1, tile]
    l1 = jnp.where(matched, jnp.abs(bp_ref[...] - bt_ref[...]), 0.0)
    l1_sum = jnp.sum(l1)
    cnt_sum = jnp.sum(matched.astype(jnp.float32))

    # Per-block partials in rows 0..3 of a lane-dense (8,128) block -> wrapper
    # reduces them, so the grid axis stays "parallel" (v7x megacore safe).
    row = jax.lax.broadcasted_iota(jnp.int32, (8, 128), 0)
    out_ref[...] = jnp.where(
        row == 0, ce_sum,
        jnp.where(row == 1, kd_sum,
                  jnp.where(row == 2, l1_sum,
                            jnp.where(row == 3, cnt_sum, 0.0))))


def _student_losses(logits_cn, labels_1n, boxes_p, boxes_t, teacher_logits_cn,
                    temperature):
    c, n = logits_cn.shape
    n_teachers = len(teacher_logits_cn)
    budget, vmem_limit = _vmem_budget_and_limit()

    # Lane tile: as large as the VMEM footprint budget allows (>= 512).
    per_col = 4 * c * (1 + n_teachers) * 2 + 64      # double-buffered f32 cols
    max_tile = 4096                                  # multiples of 128 only
    while max_tile > 512 and max_tile * per_col > budget:
        max_tile //= 2
    tile = n if n <= max_tile else max_tile
    num_blocks = pl.cdiv(n, tile)

    row_spec = pl.BlockSpec((c, tile), lambda r: (0, r))
    kernel = functools.partial(
        _student_losses_kernel, n_rows=n, n_teachers=n_teachers,
        no_object=c - 1, temperature=float(temperature), tile_cols=tile)

    in_specs = [
        row_spec,                                     # student logits [C, N]
        pl.BlockSpec((1, tile), lambda r: (0, r)),    # labels       [1, N]
        pl.BlockSpec((4, tile), lambda r: (0, r)),    # pred boxes   [4, N]
        pl.BlockSpec((4, tile), lambda r: (0, r)),    # target boxes [4, N]
    ] + [row_spec] * n_teachers                       # teacher logits [C, N]

    cost = pl.CostEstimate(
        flops=int(n * c * (10 + 12 * n_teachers) + 16 * n),
        transcendentals=int(n * c * (4 + 2 * n_teachers)),
        bytes_accessed=int(4 * n * c * (1 + n_teachers) + 4 * n + 32 * n
                           + 4 * num_blocks * 8 * 128))

    partials = pl.pallas_call(
        kernel,
        out_shape=jax.ShapeDtypeStruct((num_blocks * 8, 128), jnp.float32),
        grid=(num_blocks,),
        in_specs=in_specs,
        out_specs=pl.BlockSpec((8, 128), lambda r: (r, 0)),
        compiler_params=pltpu.CompilerParams(
            dimension_semantics=("parallel",),
            vmem_limit_bytes=vmem_limit),
        cost_estimate=cost,
    )(logits_cn, labels_1n, boxes_p, boxes_t, *teacher_logits_cn)

    sums = jnp.sum(partials.reshape(num_blocks, 8, 128)[:, :4, 0], axis=0)
    # TODO(synk): SetCriterion normalizes CE with eos_coef weighting and the
    #             bbox loss by num_boxes across the batch; simple means used.
    ce = sums[0] / float(n)
    bbox = sums[2] / jnp.maximum(sums[3], 1.0)
    kd = sums[1] * (float(temperature) ** 2) / float(n * n_teachers)
    return ce, bbox, kd


# ---------------------------------------------------------------------------
# Kernel 2: feature amalgamation for all teachers in one pass.
#   NCHW kept as [B, C, H*W]; one bf16 MXU matmul [sum(Ct),Cs] @ [Cs,tile] per
#   grid step serves every teacher; per-teacher MSE reduced in-kernel and
#   emitted as a per-block partial sum.
# ---------------------------------------------------------------------------
def _feat_amg_kernel(*refs, hw, n_teachers, ct_list, tile_hw):
    s_ref, w_ref = refs[:2]
    t_refs = refs[2:2 + n_teachers]
    out_ref = refs[2 + n_teachers]          # VMEM (8, 128) partial-sum block

    hi = pl.program_id(1)
    col = hi * tile_hw + jax.lax.broadcasted_iota(jnp.int32, (1, tile_hw), 1)
    valid = col < hw                                              # [1, tile]

    # Adapter 1x1 conv for ALL teachers as one MXU matmul (bf16 operands,
    # f32 accumulate); padded columns zeroed first.  For realistic Cs (>=256)
    # the contraction dim should be MXU-aligned; for tiny Cs this is HBM-bound.
    s_blk = jnp.where(valid, s_ref[0], 0.0).astype(jnp.bfloat16)  # [Cs, tile]
    proj = jnp.dot(w_ref[...], s_blk,
                   preferred_element_type=jnp.float32)            # [sumCt,tile]

    total = jnp.zeros((), jnp.float32)
    off = 0
    for ct, t_ref in zip(ct_list, t_refs):
        diff = proj[off:off + ct, :] - t_ref[0].astype(jnp.float32)
        diff = jnp.where(valid, diff, 0.0)
        total = total + jnp.sum(diff * diff) * (1.0 / float(ct))
        off += ct

    out_ref[...] = jnp.full((8, 128), total, jnp.float32)


def _feature_amg_loss(s_feat, teacher_feats, adapters):
    b, cs, h, w = s_feat.shape
    hw = h * w
    s3 = s_feat.reshape(b, cs, hw)                      # free reshape, no copy
    t3 = [t.reshape(b, t.shape[1], hw) for t in teacher_feats]
    ct_list = tuple(int(t.shape[1]) for t in t3)
    sum_ct = sum(ct_list)
    n_teachers = len(t3)
    # Concatenate the 1x1-conv adapters of all teachers, pre-transposed (tiny).
    w_cat_t = jnp.concatenate(adapters, axis=1).T.astype(jnp.bfloat16)

    budget, vmem_limit = _vmem_budget_and_limit()
    s_bytes = jnp.dtype(s_feat.dtype).itemsize
    t_col_bytes = sum(ct * jnp.dtype(t.dtype).itemsize
                      for ct, t in zip(ct_list, t3))
    w_bytes = sum_ct * cs * 2                           # bf16, single-buffered

    max_tile = 2048                                     # multiples of 128 only
    while max_tile > 128:
        foot = (2 * max_tile * (cs * s_bytes + t_col_bytes)   # dbl-buffered I/O
                + 4 * max_tile * sum_ct                       # f32 proj temp
                + w_bytes)
        if foot <= budget:
            break
        max_tile //= 2
    tile_hw = hw if hw <= max_tile else max_tile
    n_hw = pl.cdiv(hw, tile_hw)
    grid = (b, n_hw)

    kernel = functools.partial(
        _feat_amg_kernel, hw=hw, n_teachers=n_teachers, ct_list=ct_list,
        tile_hw=tile_hw)

    s_spec = pl.BlockSpec((1, cs, tile_hw), lambda bi, hi: (bi, 0, hi))
    t_specs = [pl.BlockSpec((1, ct, tile_hw), lambda bi, hi: (bi, 0, hi))
               for ct in ct_list]

    def weight_spec(single_buffer):
        idx = lambda bi, hi: (0, 0)
        if not single_buffer:
            return pl.BlockSpec((sum_ct, cs), idx)
        try:
            # Constant-index resident block: never re-fetched, so one buffer
            # suffices (halves its VMEM footprint; matters on v7x's 64 MiB).
            return pl.BlockSpec((sum_ct, cs), idx, pipeline_mode=pl.Buffered(1))
        except TypeError:
            return pl.BlockSpec((sum_ct, cs), idx)

    cost = pl.CostEstimate(
        flops=int(2 * b * hw * cs * sum_ct + 3 * b * hw * sum_ct),
        transcendentals=0,
        bytes_accessed=int(b * hw * (cs * s_bytes + t_col_bytes) + w_bytes
                           + 4 * b * n_hw * 8 * 128))

    def run(w_spec):
        return pl.pallas_call(
            kernel,
            out_shape=jax.ShapeDtypeStruct((b * 8, n_hw * 128), jnp.float32),
            grid=grid,
            in_specs=[s_spec, w_spec] + t_specs,
            out_specs=pl.BlockSpec((8, 128), lambda bi, hi: (bi, hi)),
            compiler_params=pltpu.CompilerParams(
                dimension_semantics=("parallel", "parallel"),
                vmem_limit_bytes=vmem_limit),
            cost_estimate=cost,
        )(s3, w_cat_t, *t3)

    try:
        out = run(weight_spec(single_buffer=True))
    except Exception:
        # Fall back to default double-buffering if single-buffering is rejected.
        out = run(weight_spec(single_buffer=False))

    partials = out.reshape(b, 8, n_hw, 128)[:, 0, :, 0]     # [b, n_hw]
    return jnp.sum(partials) / float(b * hw * n_teachers)


# ---------------------------------------------------------------------------
# AmalgamationLoss forward (glue)
# ---------------------------------------------------------------------------
def amalgamation_loss(output_s, output_t, target, student_seq, teacher_seq,
                      adapters, kd_temperature=2.0):
    losses = {}

    # --- task loss (SetCriterion, simplified) + soft-logit KD: one fused call
    # TODO(synk): Hungarian matching inside SetCriterion has no clean Pallas
    #             equivalent; targets are assumed pre-aligned per query.
    logits = output_s["pred_logits"]                     # [B, Q, C]
    B, Q, C = logits.shape
    n = B * Q
    # Lane-dense layouts: classes / box coords on sublanes, queries on lanes.
    logits_cn = logits.reshape(n, C).T
    labels_1n = target["labels"].reshape(1, n).astype(jnp.int32)
    boxes_p = output_s["pred_boxes"].reshape(n, 4).T
    boxes_t = target["boxes"].reshape(n, 4).T
    teacher_logits = [t["pred_logits"].reshape(n, C).T for t in output_t]

    ce, bbox, kd = _student_losses(logits_cn, labels_1n, boxes_p, boxes_t,
                                   teacher_logits, temperature=kd_temperature)
    losses["loss_ce"] = ce
    losses["loss_bbox"] = bbox
    losses["loss_kd"] = kd

    # --- feature amalgamation: all teachers batched into one adapter matmul --
    s_feat = list(student_seq.values())[-1]              # [B, Cs, H, W] (NCHW)
    teacher_feats = [list(t.values())[-1] for t in teacher_seq]
    losses["loss_feat"] = _feature_amg_loss(s_feat, teacher_feats, adapters)
    return losses


# ---------------------------------------------------------------------------
# Demo
# ---------------------------------------------------------------------------
if __name__ == "__main__":
    key = jax.random.PRNGKey(0)
    B, Q, NUM_CLASSES = 2, 8, 4
    C = NUM_CLASSES + 1                                  # +1 for "no object"
    CS, CT, H, W = 32, 32, 8, 8
    N_TEACHERS = 2

    keys = jax.random.split(key, 16)
    k = iter(keys)

    output_s = {
        "pred_logits": jax.random.normal(next(k), (B, Q, C), jnp.float32),
        "pred_boxes": jax.nn.sigmoid(jax.random.normal(next(k), (B, Q, 4), jnp.float32)),
    }
    output_t = [
        {
            "pred_logits": jax.random.normal(next(k), (B, Q, C), jnp.float32),
            "pred_boxes": jax.nn.sigmoid(jax.random.normal(next(k), (B, Q, 4), jnp.float32)),
        }
        for _ in range(N_TEACHERS)
    ]
    target = {
        "labels": jax.random.randint(next(k), (B, Q), 0, C, dtype=jnp.int32),
        "boxes": jax.nn.sigmoid(jax.random.normal(next(k), (B, Q, 4), jnp.float32)),
    }
    student_seq = OrderedDict(
        layer4=jax.random.normal(next(k), (B, CS, H, W), jnp.float32))
    teacher_seq = [
        OrderedDict(layer4=jax.random.normal(next(k), (B, CT, H, W), jnp.float32))
        for _ in range(N_TEACHERS)
    ]
    adapters = [
        jax.random.normal(next(k), (CS, CT), jnp.float32) * (1.0 / jnp.sqrt(CS))
        for _ in range(N_TEACHERS)
    ]

    losses = amalgamation_loss(output_s, output_t, target,
                               student_seq, teacher_seq, adapters)
    losses = jax.tree_util.tree_map(jax.block_until_ready, losses)

    for name, val in losses.items():
        assert jnp.isfinite(val), f"non-finite loss: {name}"
    print("KERNEL_OK")
</pallas_src>

<mosaic_0001>
module attributes {stable_mosaic.version = 11 : i64} {
  func.func @_student_losses_kernel(%arg0: i32, %arg1: memref<5x16xf32, #tpu.memory_space<vmem>>, %arg2: memref<1x16xi32, #tpu.memory_space<vmem>>, %arg3: memref<4x16xf32, #tpu.memory_space<vmem>>, %arg4: memref<4x16xf32, #tpu.memory_space<vmem>>, %arg5: memref<5x16xf32, #tpu.memory_space<vmem>>, %arg6: memref<5x16xf32, #tpu.memory_space<vmem>>, %arg7: memref<8x128xf32, #tpu.memory_space<vmem>>) attributes {dimension_semantics = [#tpu.dimension_semantics<parallel>], iteration_bounds = array<i64: 1>, scalar_prefetch = 0 : i64, scratch_operands = 0 : i64, tpu.core_type = #tpu.core_type<tc>, window_params = [{transform_indices = @transform_0, window_bounds = array<i64: 5, 16>}, {transform_indices = @transform_1, window_bounds = array<i64: 1, 16>}, {transform_indices = @transform_2, window_bounds = array<i64: 4, 16>}, {transform_indices = @transform_3, window_bounds = array<i64: 4, 16>}, {transform_indices = @transform_4, window_bounds = array<i64: 5, 16>}, {transform_indices = @transform_5, window_bounds = array<i64: 5, 16>}, {transform_indices = @transform_6, window_bounds = array<i64: 8, 128>}]} {
    %c16_i32 = arith.constant 16 : i32
    %0 = arith.muli %arg0, %c16_i32 : i32
    %1 = tpu.iota {dimensions = array<i32: 1>} : vector<1x16xi32>
    %2 = vector.broadcast %0 : i32 to vector<1x16xi32>
    %3 = arith.addi %2, %1 : vector<1x16xi32>
    %c16_i32_0 = arith.constant 16 : i32
    %4 = vector.broadcast %c16_i32_0 : i32 to vector<1x16xi32>
    %5 = arith.cmpi slt, %3, %4 : vector<1x16xi32>
    %c0 = arith.constant 0 : index
    %c0_1 = arith.constant 0 : index
    %6 = vector.load %arg1[%c0, %c0_1] : memref<5x16xf32, #tpu.memory_space<vmem>>, vector<5x16xf32>
    %cst = arith.constant 0.000000e+00 : f32
    %7 = vector.shape_cast %5 : vector<1x16xi1> to vector<1x16xi1>
    %8 = vector.broadcast %7 : vector<1x16xi1> to vector<5x16xi1>
    %9 = vector.broadcast %cst : f32 to vector<5x16xf32>
    %10 = arith.select %8, %6, %9 : vector<5x16xi1>, vector<5x16xf32>
    %cst_2 = arith.constant dense<0xFF800000> : vector<16xf32>
    %11 = vector.multi_reduction <maximumf>, %10, %cst_2 [0] : vector<5x16xf32> to vector<16xf32>
    %12 = vector.shape_cast %11 : vector<16xf32> to vector<1x16xf32>
    %13 = vector.broadcast %12 : vector<1x16xf32> to vector<5x16xf32>
    %14 = arith.subf %10, %13 : vector<5x16xf32>
    %15 = math.exp %14 : vector<5x16xf32>
    %16 = vector.broadcast %12 : vector<1x16xf32> to vector<5x16xf32>
    %17 = arith.subf %10, %16 : vector<5x16xf32>
    %cst_3 = arith.constant dense<0.000000e+00> : vector<16xf32>
    %18 = vector.multi_reduction <add>, %15, %cst_3 [0] : vector<5x16xf32> to vector<16xf32>
    %19 = vector.shape_cast %18 : vector<16xf32> to vector<1x16xf32>
    %20 = math.log %19 : vector<1x16xf32>
    %21 = vector.broadcast %20 : vector<1x16xf32> to vector<5x16xf32>
    %22 = arith.subf %17, %21 : vector<5x16xf32>
    %c0_4 = arith.constant 0 : index
    %c0_5 = arith.constant 0 : index
    %23 = vector.load %arg2[%c0_4, %c0_5] : memref<1x16xi32, #tpu.memory_space<vmem>>, vector<1x16xi32>
    %24 = tpu.iota {dimensions = array<i32: 0>} : vector<5x16xi32>
    %25 = vector.broadcast %23 : vector<1x16xi32> to vector<5x16xi32>
    %26 = arith.cmpi eq, %24, %25 : vector<5x16xi32>
    %cst_6 = arith.constant 0.000000e+00 : f32
    %27 = vector.broadcast %cst_6 : f32 to vector<5x16xf32>
    %28 = arith.select %26, %22, %27 : vector<5x16xi1>, vector<5x16xf32>
    %cst_7 = arith.constant dense<0.000000e+00> : vector<16xf32>
    %29 = vector.multi_reduction <add>, %28, %cst_7 [0] : vector<5x16xf32> to vector<16xf32>
    %30 = vector.shape_cast %29 : vector<16xf32> to vector<1x16xf32>
    %cst_8 = arith.constant 0.000000e+00 : f32
    %31 = vector.broadcast %cst_8 : f32 to vector<1x16xf32>
    %32 = arith.subf %31, %30 : vector<1x16xf32>
    %cst_9 = arith.constant 0.000000e+00 : f32
    %33 = vector.broadcast %cst_9 : f32 to vector<1x16xf32>
    %34 = arith.select %5, %32, %33 : vector<1x16xi1>, vector<1x16xf32>
    %35 = vector.shape_cast %34 : vector<1x16xf32> to vector<1x1x16xf32>
    %cst_10 = arith.constant dense<0.000000e+00> : vector<1xf32>
    %36 = vector.multi_reduction <add>, %35, %cst_10 [1, 2] : vector<1x1x16xf32> to vector<1xf32>
    %37 = vector.shape_cast %36 : vector<1xf32> to vector<1x1x1xf32>
    %38 = vector.extract %37[0, 0, 0] : f32 from vector<1x1x1xf32>
    %cst_11 = arith.constant 5.000000e-01 : f32
    %39 = vector.broadcast %cst_11 : f32 to vector<5x16xf32>
    %40 = arith.mulf %10, %39 : vector<5x16xf32>
    %cst_12 = arith.constant dense<0xFF800000> : vector<16xf32>
    %41 = vector.multi_reduction <maximumf>, %40, %cst_12 [0] : vector<5x16xf32> to vector<16xf32>
    %42 = vector.shape_cast %41 : vector<16xf32> to vector<1x16xf32>
    %43 = vector.broadcast %42 : vector<1x16xf32> to vector<5x16xf32>
    %44 = arith.subf %40, %43 : vector<5x16xf32>
    %45 = math.exp %44 : vector<5x16xf32>
    %46 = vector.broadcast %42 : vector<1x16xf32> to vector<5x16xf32>
    %47 = arith.subf %40, %46 : vector<5x16xf32>
    %cst_13 = arith.constant dense<0.000000e+00> : vector<16xf32>
    %48 = vector.multi_reduction <add>, %45, %cst_13 [0] : vector<5x16xf32> to vector<16xf32>
    %49 = vector.shape_cast %48 : vector<16xf32> to vector<1x16xf32>
    %50 = math.log %49 : vector<1x16xf32>
    %51 = vector.broadcast %50 : vector<1x16xf32> to vector<5x16xf32>
    %52 = arith.subf %47, %51 : vector<5x16xf32>
    %c0_14 = arith.constant 0 : index
    %c0_15 = arith.constant 0 : index
    %53 = vector.load %arg5[%c0_14, %c0_15] : memref<5x16xf32, #tpu.memory_space<vmem>>, vector<5x16xf32>
    %cst_16 = arith.constant 0.000000e+00 : f32
    %54 = vector.shape_cast %5 : vector<1x16xi1> to vector<1x16xi1>
    %55 = vector.broadcast %54 : vector<1x16xi1> to vector<5x16xi1>
    %56 = vector.broadcast %cst_16 : f32 to vector<5x16xf32>
    %57 = arith.select %55, %53, %56 : vector<5x16xi1>, vector<5x16xf32>
    %cst_17 = arith.constant 5.000000e-01 : f32
    %58 = vector.broadcast %cst_17 : f32 to vector<5x16xf32>
    %59 = arith.mulf %57, %58 : vector<5x16xf32>
    %cst_18 = arith.constant dense<0xFF800000> : vector<16xf32>
    %60 = vector.multi_reduction <maximumf>, %59, %cst_18 [0] : vector<5x16xf32> to vector<16xf32>
    %61 = vector.shape_cast %60 : vector<16xf32> to vector<1x16xf32>
    %62 = vector.broadcast %61 : vector<1x16xf32> to vector<5x16xf32>
    %63 = arith.subf %59, %62 : vector<5x16xf32>
    %64 = math.exp %63 : vector<5x16xf32>
    %cst_19 = arith.constant dense<0.000000e+00> : vector<16xf32>
    %65 = vector.multi_reduction <add>, %64, %cst_19 [0] : vector<5x16xf32> to vector<16xf32>
    %66 = vector.shape_cast %65 : vector<16xf32> to vector<1x16xf32>
    %67 = vector.broadcast %61 : vector<1x16xf32> to vector<5x16xf32>
    %68 = arith.subf %59, %67 : vector<5x16xf32>
    %69 = math.log %66 : vector<1x16xf32>
    %70 = vector.broadcast %69 : vector<1x16xf32> to vector<5x16xf32>
    %71 = arith.subf %68, %70 : vector<5x16xf32>
    %72 = tpu.reciprocal %66 {approx = true} : vector<1x16xf32> -> vector<1x16xf32>
    %73 = vector.broadcast %72 : vector<1x16xf32> to vector<5x16xf32>
    %74 = arith.mulf %64, %73 : vector<5x16xf32>
    %75 = arith.subf %71, %52 : vector<5x16xf32>
    %76 = arith.mulf %74, %75 : vector<5x16xf32>
    %cst_20 = arith.constant dense<0.000000e+00> : vector<16xf32>
    %77 = vector.multi_reduction <add>, %76, %cst_20 [0] : vector<5x16xf32> to vector<16xf32>
    %78 = vector.shape_cast %77 : vector<16xf32> to vector<1x16xf32>
    %cst_21 = arith.constant 0.000000e+00 : f32
    %79 = vector.broadcast %cst_21 : f32 to vector<1x16xf32>
    %80 = arith.select %5, %78, %79 : vector<1x16xi1>, vector<1x16xf32>
    %81 = vector.shape_cast %80 : vector<1x16xf32> to vector<1x1x16xf32>
    %cst_22 = arith.constant dense<0.000000e+00> : vector<1xf32>
    %82 = vector.multi_reduction <add>, %81, %cst_22 [1, 2] : vector<1x1x16xf32> to vector<1xf32>
    %83 = vector.shape_cast %82 : vector<1xf32> to vector<1x1x1xf32>
    %84 = vector.extract %83[0, 0, 0] : f32 from vector<1x1x1xf32>
    %cst_23 = arith.constant 0.000000e+00 : f32
    %85 = arith.addf %cst_23, %84 : f32
    %c0_24 = arith.constant 0 : index
    %c0_25 = arith.constant 0 : index
    %86 = vector.load %arg6[%c0_24, %c0_25] : memref<5x16xf32, #tpu.memory_space<vmem>>, vector<5x16xf32>
    %cst_26 = arith.constant 0.000000e+00 : f32
    %87 = vector.shape_cast %5 : vector<1x16xi1> to vector<1x16xi1>
    %88 = vector.broadcast %87 : vector<1x16xi1> to vector<5x16xi1>
    %89 = vector.broadcast %cst_26 : f32 to vector<5x16xf32>
    %90 = arith.select %88, %86, %89 : vector<5x16xi1>, vector<5x16xf32>
    %cst_27 = arith.constant 5.000000e-01 : f32
    %91 = vector.broadcast %cst_27 : f32 to vector<5x16xf32>
    %92 = arith.mulf %90, %91 : vector<5x16xf32>
    %cst_28 = arith.constant dense<0xFF800000> : vector<16xf32>
    %93 = vector.multi_reduction <maximumf>, %92, %cst_28 [0] : vector<5x16xf32> to vector<16xf32>
    %94 = vector.shape_cast %93 : vector<16xf32> to vector<1x16xf32>
    %95 = vector.broadcast %94 : vector<1x16xf32> to vector<5x16xf32>
    %96 = arith.subf %92, %95 : vector<5x16xf32>
    %97 = math.exp %96 : vector<5x16xf32>
    %cst_29 = arith.constant dense<0.000000e+00> : vector<16xf32>
    %98 = vector.multi_reduction <add>, %97, %cst_29 [0] : vector<5x16xf32> to vector<16xf32>
    %99 = vector.shape_cast %98 : vector<16xf32> to vector<1x16xf32>
    %100 = vector.broadcast %94 : vector<1x16xf32> to vector<5x16xf32>
    %101 = arith.subf %92, %100 : vector<5x16xf32>
    %102 = math.log %99 : vector<1x16xf32>
    %103 = vector.broadcast %102 : vector<1x16xf32> to vector<5x16xf32>
    %104 = arith.subf %101, %103 : vector<5x16xf32>
    %105 = tpu.reciprocal %99 {approx = true} : vector<1x16xf32> -> vector<1x16xf32>
    %106 = vector.broadcast %105 : vector<1x16xf32> to vector<5x16xf32>
    %107 = arith.mulf %97, %106 : vector<5x16xf32>
    %108 = arith.subf %104, %52 : vector<5x16xf32>
    %109 = arith.mulf %107, %108 : vector<5x16xf32>
    %cst_30 = arith.constant dense<0.000000e+00> : vector<16xf32>
    %110 = vector.multi_reduction <add>, %109, %cst_30 [0] : vector<5x16xf32> to vector<16xf32>
    %111 = vector.shape_cast %110 : vector<16xf32> to vector<1x16xf32>
    %cst_31 = arith.constant 0.000000e+00 : f32
    %112 = vector.broadcast %cst_31 : f32 to vector<1x16xf32>
    %113 = arith.select %5, %111, %112 : vector<1x16xi1>, vector<1x16xf32>
    %114 = vector.shape_cast %113 : vector<1x16xf32> to vector<1x1x16xf32>
    %cst_32 = arith.constant dense<0.000000e+00> : vector<1xf32>
    %115 = vector.multi_reduction <add>, %114, %cst_32 [1, 2] : vector<1x1x16xf32> to vector<1xf32>
    %116 = vector.shape_cast %115 : vector<1xf32> to vector<1x1x1xf32>
    %117 = vector.extract %116[0, 0, 0] : f32 from vector<1x1x1xf32>
    %118 = arith.addf %85, %117 : f32
    %c4_i32 = arith.constant 4 : i32
    %119 = vector.broadcast %c4_i32 : i32 to vector<1x16xi32>
    %120 = arith.cmpi ne, %23, %119 : vector<1x16xi32>
    %121 = arith.andi %5, %120 : vector<1x16xi1>
    %c0_33 = arith.constant 0 : index
    %c0_34 = arith.constant 0 : index
    %122 = vector.load %arg3[%c0_33, %c0_34] : memref<4x16xf32, #tpu.memory_space<vmem>>, vector<4x16xf32>
    %c0_35 = arith.constant 0 : index
    %c0_36 = arith.constant 0 : index
    %123 = vector.load %arg4[%c0_35, %c0_36] : memref<4x16xf32, #tpu.memory_space<vmem>>, vector<4x16xf32>
    %124 = arith.subf %122, %123 : vector<4x16xf32>
    %125 = math.absf %124 : vector<4x16xf32>
    %cst_37 = arith.constant 0.000000e+00 : f32
    %126 = vector.shape_cast %121 : vector<1x16xi1> to vector<1x16xi1>
    %127 = vector.broadcast %126 : vector<1x16xi1> to vector<4x16xi1>
    %128 = vector.broadcast %cst_37 : f32 to vector<4x16xf32>
    %129 = arith.select %127, %125, %128 : vector<4x16xi1>, vector<4x16xf32>
    %130 = vector.shape_cast %129 : vector<4x16xf32> to vector<1x4x16xf32>
    %cst_38 = arith.constant dense<0.000000e+00> : vector<1xf32>
    %131 = vector.multi_reduction <add>, %130, %cst_38 [1, 2] : vector<1x4x16xf32> to vector<1xf32>
    %132 = vector.shape_cast %131 : vector<1xf32> to vector<1x1x1xf32>
    %133 = vector.extract %132[0, 0, 0] : f32 from vector<1x1x1xf32>
    %134 = arith.extui %121 : vector<1x16xi1> to vector<1x16xi32>
    %135 = arith.sitofp %134 : vector<1x16xi32> to vector<1x16xf32>
    %136 = vector.shape_cast %135 : vector<1x16xf32> to vector<1x1x16xf32>
    %cst_39 = arith.constant dense<0.000000e+00> : vector<1xf32>
    %137 = vector.multi_reduction <add>, %136, %cst_39 [1, 2] : vector<1x1x16xf32> to vector<1xf32>
    %138 = vector.shape_cast %137 : vector<1xf32> to vector<1x1x1xf32>
    %139 = vector.extract %138[0, 0, 0] : f32 from vector<1x1x1xf32>
    %140 = tpu.iota {dimensions = array<i32: 0>} : vector<8x128xi32>
    %c0_i32 = arith.constant 0 : i32
    %141 = vector.broadcast %c0_i32 : i32 to vector<8x128xi32>
    %142 = arith.cmpi eq, %140, %141 : vector<8x128xi32>
    %c1_i32 = arith.constant 1 : i32
    %143 = vector.broadcast %c1_i32 : i32 to vector<8x128xi32>
    %144 = arith.cmpi eq, %140, %143 : vector<8x128xi32>
    %c2_i32 = arith.constant 2 : i32
    %145 = vector.broadcast %c2_i32 : i32 to vector<8x128xi32>
    %146 = arith.cmpi eq, %140, %145 : vector<8x128xi32>
    %c3_i32 = arith.constant 3 : i32
    %147 = vector.broadcast %c3_i32 : i32 to vector<8x128xi32>
    %148 = arith.cmpi eq, %140, %147 : vector<8x128xi32>
    %cst_40 = arith.constant 0.000000e+00 : f32
    %149 = vector.broadcast %139 : f32 to vector<8x128xf32>
    %150 = vector.broadcast %cst_40 : f32 to vector<8x128xf32>
    %151 = arith.select %148, %149, %150 : vector<8x128xi1>, vector<8x128xf32>
    %152 = vector.broadcast %133 : f32 to vector<8x128xf32>
    %153 = arith.select %146, %152, %151 : vector<8x128xi1>, vector<8x128xf32>
    %154 = vector.broadcast %118 : f32 to vector<8x128xf32>
    %155 = arith.select %144, %154, %153 : vector<8x128xi1>, vector<8x128xf32>
    %156 = vector.broadcast %38 : f32 to vector<8x128xf32>
    %157 = arith.select %142, %156, %155 : vector<8x128xi1>, vector<8x128xf32>
    %c0_41 = arith.constant 0 : index
    %c0_42 = arith.constant 0 : index
    %158 = vector.load %arg7[%c0_41, %c0_42] : memref<8x128xf32, #tpu.memory_space<vmem>>, vector<8x128xf32>
    tpu.vector_store %arg7[%c0_41, %c0_42], %157 {strides = array<i32>} : memref<8x128xf32, #tpu.memory_space<vmem>>, vector<8x128xf32>,
    return
  }
  func.func @transform_0(%arg0: i32) -> (i32, i32) {
    %c0_i32 = arith.constant 0 : i32
    %c0_i32_0 = arith.constant 0 : i32
    return %c0_i32, %arg0 : i32, i32
  }
  func.func @transform_1(%arg0: i32) -> (i32, i32) {
    %c0_i32 = arith.constant 0 : i32
    %c0_i32_0 = arith.constant 0 : i32
    return %c0_i32, %arg0 : i32, i32
  }
  func.func @transform_2(%arg0: i32) -> (i32, i32) {
    %c0_i32 = arith.constant 0 : i32
    %c0_i32_0 = arith.constant 0 : i32
    return %c0_i32, %arg0 : i32, i32
  }
  func.func @transform_3(%arg0: i32) -> (i32, i32) {
    %c0_i32 = arith.constant 0 : i32
    %c0_i32_0 = arith.constant 0 : i32
    return %c0_i32, %arg0 : i32, i32
  }
  func.func @transform_4(%arg0: i32) -> (i32, i32) {
    %c0_i32 = arith.constant 0 : i32
    %c0_i32_0 = arith.constant 0 : i32
    return %c0_i32, %arg0 : i32, i32
  }
  func.func @transform_5(%arg0: i32) -> (i32, i32) {
    %c0_i32 = arith.constant 0 : i32
    %c0_i32_0 = arith.constant 0 : i32
    return %c0_i32, %arg0 : i32, i32
  }
  func.func @transform_6(%arg0: i32) -> (i32, i32) {
    %c0_i32 = arith.constant 0 : i32
    %c0_i32_0 = arith.constant 0 : i32
    return %arg0, %c0_i32 : i32, i32
  }
}

</mosaic_0001>

<llo_original>
// kernel: tpu_custom_call.1
$region0: #{tpu_custom_call.1}
  #allocation0 [shape = 'u32[]', space=smem, size = 0x4, offset = 0x4, fixed_abs, tag = 'smem constant byte address 0x4 - core index']
  #allocation1 [shape = 'u32[144,128]{1,0:T(1,128)}', space=vmem, size = 0x12000, scoped, tag = 'internal scratch']
  %s0 = inlined_call_operand.hbm [shape: f32[5,16], index: 0, kind: input, shape index: {}]
  %s1 = inlined_call_operand.vmem [shape: s32[1,16], index: 1, kind: input, shape index: {}]
  %s2 = inlined_call_operand.hbm [shape: f32[4,16], index: 2, kind: input, shape index: {}]
  %s3 = inlined_call_operand.hbm [shape: f32[4,16], index: 3, kind: input, shape index: {}]
  %s4 = inlined_call_operand.hbm [shape: f32[5,16], index: 4, kind: input, shape index: {}]
  %s5 = inlined_call_operand.vmem [shape: f32[5,16], index: 5, kind: input, shape index: {}]
  %s6 = inlined_call_operand.hbm [shape: f32[8,128], index: 6, kind: output, shape index: {}]
  %s7 = sld [smem:[#allocation0]]
  $region50: #{tpu_custom_call.1} parent=0
    _
  %s9 = ssub.s32 1, %s7
  %s10 = scalar_select 0, %s9, %s7
  $region1: #{tpu_custom_call.1} parent=0
    #allocation2 [shape = 'u8[4096]{0}', space=vmem, size = 0x1000, scoped, tag = 'input window, operand 0, single buffered']
    #allocation3 [shape = 's32[1]{0}', space=sflag, size = 0x4, scoped, tag = 'scoped memory for tpu_custom_call.1']
    #allocation4 [shape = 's32[1]{0}', space=sflag, size = 0x4, scoped, tag = 'scoped memory for tpu_custom_call.1']
    #allocation5 [shape = 'u8[2048]{0}', space=vmem, size = 0x800, scoped, tag = 'input window, operand 2, single buffered']
    #allocation6 [shape = 's32[1]{0}', space=sflag, size = 0x4, scoped, tag = 'scoped memory for tpu_custom_call.1']
    #allocation7 [shape = 'u8[2048]{0}', space=vmem, size = 0x800, scoped, tag = 'input window, operand 3, single buffered']
    #allocation8 [shape = 'u8[4096]{0}', space=vmem, size = 0x1000, scoped, tag = 'input window, operand 4, single buffered']
    #allocation9 [shape = 's32[1]{0}', space=sflag, size = 0x4, scoped, tag = 'scoped memory for tpu_custom_call.1']
    #allocation10 [shape = 'u8[4096]{0}', space=vmem, size = 0x1000, scoped, tag = 'output window, operand 0, single buffered']
    %11 = vsyncpa [#allocation3], 0
    %12 = vsyncpa [#allocation6], 0
    %13 = vsyncpa [#allocation9], 0
    %14 = vsyncpa [#allocation4], 0
    // Predicated region
    $region2: #{tpu_custom_call.1} parent=1 // pred_check
      _
    $region3: #{tpu_custom_call.1} parent=1 // pred_check_branch
      %16 = sbr.rel (0) target = $region5
    $region4: #{tpu_custom_call.1} parent=1 // pred_region
      %s18 = ssub.s32 128, 128
      %19 = vsyncadd [#allocation3], %s18
      %s21 = sshll.u32 [#allocation2], 4
      %s22 = int_to_ptr.vmem [resolvable:$true] %s21
      %24 = dma.hbm_to_vmem [thread:$0]  %s0, 128, %s22, [#allocation3]
    $region5: #{tpu_custom_call.1} parent=1 // pred_fallthru
      _
    // Predicated region
    $region6: #{tpu_custom_call.1} parent=1 // pred_check
      _
    $region7: #{tpu_custom_call.1} parent=1 // pred_check_branch
      %26 = sbr.rel (0) target = $region9
    $region8: #{tpu_custom_call.1} parent=1 // pred_region
      _
    $region9: #{tpu_custom_call.1} parent=1 // pred_fallthru
      _
    // Predicated region
    $region10: #{tpu_custom_call.1} parent=1 // pred_check
      _
    $region11: #{tpu_custom_call.1} parent=1 // pred_check_branch
      %28 = sbr.rel (0) target = $region13
    $region12: #{tpu_custom_call.1} parent=1 // pred_region
      %s30 = ssub.s32 64, 64
      %31 = vsyncadd [#allocation6], %s30
      %s33 = sshll.u32 [#allocation5], 4
      %s34 = int_to_ptr.vmem [resolvable:$true] %s33
      %36 = dma.hbm_to_vmem [thread:$0]  %s2, 64, %s34, [#allocation6]
    $region13: #{tpu_custom_call.1} parent=1 // pred_fallthru
      _
    // Predicated region
    $region14: #{tpu_custom_call.1} parent=1 // pred_check
      _
    $region15: #{tpu_custom_call.1} parent=1 // pred_check_branch
      %38 = sbr.rel (0) target = $region17
    $region16: #{tpu_custom_call.1} parent=1 // pred_region
      %s40 = ssub.s32 64, 64
      %41 = vsyncadd [#allocation6], %s40
      %s43 = sshll.u32 [#allocation7], 4
      %s44 = int_to_ptr.vmem [resolvable:$true] %s43
      %46 = dma.hbm_to_vmem [thread:$0]  %s3, 64, %s44, [#allocation6]
    $region17: #{tpu_custom_call.1} parent=1 // pred_fallthru
      _
    // Predicated region
    $region18: #{tpu_custom_call.1} parent=1 // pred_check
      _
    $region19: #{tpu_custom_call.1} parent=1 // pred_check_branch
      %48 = sbr.rel (0) target = $region21
    $region20: #{tpu_custom_call.1} parent=1 // pred_region
      %s50 = ssub.s32 128, 128
      %51 = vsyncadd [#allocation9], %s50
      %s53 = sshll.u32 [#allocation8], 4
      %s54 = int_to_ptr.vmem [resolvable:$true] %s53
      %56 = dma.hbm_to_vmem [thread:$0]  %s4, 128, %s54, [#allocation9]
    $region21: #{tpu_custom_call.1} parent=1 // pred_fallthru
      _
    // Predicated region
    $region22: #{tpu_custom_call.1} parent=1 // pred_check
      _
    $region23: #{tpu_custom_call.1} parent=1 // pred_check_branch
      %58 = sbr.rel (0) target = $region25
    $region24: #{tpu_custom_call.1} parent=1 // pred_region
      _
    $region25: #{tpu_custom_call.1} parent=1 // pred_fallthru
      _
    // Predicated region
    $region26: #{tpu_custom_call.1} parent=1 // pred_check
      _
    $region27: #{tpu_custom_call.1} parent=1 // pred_check_branch
      %60 = sbr.rel (0) target = $region29
    $region28: #{tpu_custom_call.1} parent=1 // pred_region
      %61 = dma.done [#allocation3], 128
    $region29: #{tpu_custom_call.1} parent=1 // pred_fallthru
      _
    // Predicated region
    $region30: #{tpu_custom_call.1} parent=1 // pred_check
      _
    $region31: #{tpu_custom_call.1} parent=1 // pred_check_branch
      %63 = sbr.rel (0) target = $region33
    $region32: #{tpu_custom_call.1} parent=1 // pred_region
      %64 = dma.done [#allocation6], 64
    $region33: #{tpu_custom_call.1} parent=1 // pred_fallthru
      _
    // Predicated region
    $region34: #{tpu_custom_call.1} parent=1 // pred_check
      _
    $region35: #{tpu_custom_call.1} parent=1 // pred_check_branch
      %66 = sbr.rel (0) target = $region37
    $region36: #{tpu_custom_call.1} parent=1 // pred_region
      %67 = dma.done [#allocation6], 64
    $region37: #{tpu_custom_call.1} parent=1 // pred_fallthru
      _
    // Predicated region
    $region38: #{tpu_custom_call.1} parent=1 // pred_check
      _
    $region39: #{tpu_custom_call.1} parent=1 // pred_check_branch
      %69 = sbr.rel (0) target = $region41
    $region40: #{tpu_custom_call.1} parent=1 // pred_region
      %70 = dma.done [#allocation9], 128
    $region41: #{tpu_custom_call.1} parent=1 // pred_fallthru
      _
    %s71 = smul.u32 0, 16
    %v72 = vlaneseq
    %v73 = vand.u32 %v72, 127
    %v74 = vstv %s71
    %v75 = vadd.s32 %v74, %v73
    %vm76 = vcmp.lt.s32.totalorder %v75, 16
    %v77 = vld [vmem:[#allocation2] sm:$0x1f]
    %v78 = vsel %vm76, 1, 0
    %vm79 = vcmp.eq.s32.totalorder %v78, 1
    %v80 = vsel %vm79, %v77, 0.0
    %vm81 = vcmask 126976
    %v82 = vsel %vm81, %v80, -inf
    %v83 = vrot.slane %v82, 4
    %v84 = vmax.f32 %v82, %v83
    %v85 = vrot.slane %v84, 2
    %v86 = vmax.f32 %v84, %v85
    %v87 = vrot.slane %v86, 1
    %v88 = vmax.f32 %v86, %v87
    %v89 = vsub.f32 %v80, %v88
    %v90 = vmul.f32 %v89, 1.442695
    %v91 = vpow.pop %v90
    %v92 = vsel %vm81, %v91, 0.0
    %v93 = vrot.slane %v92, 4
    %v94 = vadd.f32 %v92, %v93
    %v95 = vrot.slane %v94, 2
    %v96 = vadd.f32 %v94, %v95
    %v97 = vrot.slane %v96, 1
    %v98 = vadd.f32 %v96, %v97
    %v99 = vlog2.pop %v98
    %v100 = vmul.f32 %v99, 0.6931472
    %v101 = vsub.f32 %v89, %v100
    %v102 = vld [vmem:[%s1] sm:$0x1]
    %v103 = vlaneseq
    %v104 = vshrl.u32 %v103, 7
    %v105 = vlaneseq
    %v106 = vshrl.u32 %v105, 7
    %v107 = vsub.s32 0, %v106
    %v108 = vrot.slane %v102, %v107
    %vm109 = vcmp.eq.s32.totalorder %v104, %v108
    %v110 = vsel %vm109, %v101, 0.0
    %v111 = vsel %vm81, %v110, 0.0
    %v112 = vrot.slane %v111, 4
    %v113 = vadd.f32 %v111, %v112
    %v114 = vrot.slane %v113, 2
    %v115 = vadd.f32 %v113, %v114
    %v116 = vrot.slane %v115, 1
    %v117 = vadd.f32 %v115, %v116
    %v118 = vsub.f32 0.0, %v117
    %v119 = vsel %vm76, %v118, 0.0
    %vm120 = vcmask 122880
    %v121 = vsel %vm120, %v119, 0.0
    %122 = vadd.xlane.f32.xlu0 %v121
    %v123 = vpop.xlane.xlu0 %122
    %v124 = vrot.slane %v123, 4
    %v125 = vadd.f32 %v123, %v124
    %v126 = vrot.slane %v125, 2
    %v127 = vadd.f32 %v125, %v126
    %v128 = vrot.slane %v127, 1
    %v129 = vadd.f32 %v127, %v128
    %s130 = vtos %v129
    %v131 = vmul.f32 %v80, 0.5
    %v132 = vsel %vm81, %v131, -inf
    %v133 = vrot.slane %v132, 4
    %v134 = vmax.f32 %v132, %v133
    %v135 = vrot.slane %v134, 2
    %v136 = vmax.f32 %v134, %v135
    %v137 = vrot.slane %v136, 1
    %v138 = vmax.f32 %v136, %v137
    %v139 = vsub.f32 %v131, %v138
    %v140 = vmul.f32 %v139, 1.442695
    %v141 = vpow.pop %v140
    %v142 = vsel %vm81, %v141, 0.0
    %v143 = vrot.slane %v142, 4
    %v144 = vadd.f32 %v142, %v143
    %v145 = vrot.slane %v144, 2
    %v146 = vadd.f32 %v144, %v145
    %v147 = vrot.slane %v146, 1
    %v148 = vadd.f32 %v146, %v147
    %v149 = vlog2.pop %v148
    %v150 = vmul.f32 %v149, 0.6931472
    %v151 = vsub.f32 %v139, %v150
    %v152 = vld [vmem:[#allocation8] sm:$0x1f]
    %v153 = vsel %vm79, %v152, 0.0
    %v154 = vmul.f32 %v153, 0.5
    %v155 = vsel %vm81, %v154, -inf
    %v156 = vrot.slane %v155, 4
    %v157 = vmax.f32 %v155, %v156
    %v158 = vrot.slane %v157, 2
    %v159 = vmax.f32 %v157, %v158
    %v160 = vrot.slane %v159, 1
    %v161 = vmax.f32 %v159, %v160
    %v162 = vsub.f32 %v154, %v161
    %v163 = vmul.f32 %v162, 1.442695
    %v164 = vpow.pop %v163
    %v165 = vsel %vm81, %v164, 0.0
    %v166 = vrot.slane %v165, 4
    %v167 = vadd.f32 %v165, %v166
    %v168 = vrot.slane %v167, 2
    %v169 = vadd.f32 %v167, %v168
    %v170 = vrot.slane %v169, 1
    %v171 = vadd.f32 %v169, %v170
    %v172 = vlog2.pop %v171
    %v173 = vmul.f32 %v172, 0.6931472
    %v174 = vsub.f32 %v162, %v173
    %v175 = vrcp.pop %v171
    %v176 = vmul.f32 %v164, %v175
    %v177 = vsub.f32 %v174, %v151
    %v178 = vmul.f32 %v176, %v177
    %v179 = vsel %vm81, %v178, 0.0
    %v180 = vrot.slane %v179, 4
    %v181 = vadd.f32 %v179, %v180
    %v182 = vrot.slane %v181, 2
    %v183 = vadd.f32 %v181, %v182
    %v184 = vrot.slane %v183, 1
    %v185 = vadd.f32 %v183, %v184
    %v186 = vsel %vm76, %v185, 0.0
    %v187 = vsel %vm120, %v186, 0.0
    %188 = vadd.xlane.f32.xlu0 %v187
    %v189 = vpop.xlane.xlu0 %188
    %v190 = vrot.slane %v189, 4
    %v191 = vadd.f32 %v189, %v190
    %v192 = vrot.slane %v191, 2
    %v193 = vadd.f32 %v191, %v192
    %v194 = vrot.slane %v193, 1
    %v195 = vadd.f32 %v193, %v194
    %s196 = vtos %v195
    %s197 = sadd.f32 %s196, 0.0
    %v198 = vld [vmem:[%s5] sm:$0x1f]
    %v199 = vsel %vm79, %v198, 0.0
    %v200 = vmul.f32 %v199, 0.5
    %v201 = vsel %vm81, %v200, -inf
    %v202 = vrot.slane %v201, 4
    %v203 = vmax.f32 %v201, %v202
    %v204 = vrot.slane %v203, 2
    %v205 = vmax.f32 %v203, %v204
    %v206 = vrot.slane %v205, 1
    %v207 = vmax.f32 %v205, %v206
    %v208 = vsub.f32 %v200, %v207
    %v209 = vmul.f32 %v208, 1.442695
    %v210 = vpow.pop %v209
    %v211 = vsel %vm81, %v210, 0.0
    %v212 = vrot.slane %v211, 4
    %v213 = vadd.f32 %v211, %v212
    %v214 = vrot.slane %v213, 2
    %v215 = vadd.f32 %v213, %v214
    %v216 = vrot.slane %v215, 1
    %v217 = vadd.f32 %v215, %v216
    %v218 = vlog2.pop %v217
    %v219 = vmul.f32 %v218, 0.6931472
    %v220 = vsub.f32 %v208, %v219
    %v221 = vrcp.pop %v217
    %v222 = vmul.f32 %v210, %v221
    %v223 = vsub.f32 %v220, %v151
    %v224 = vmul.f32 %v222, %v223
    %v225 = vsel %vm81, %v224, 0.0
    %v226 = vrot.slane %v225, 4
    %v227 = vadd.f32 %v225, %v226
    %v228 = vrot.slane %v227, 2
    %v229 = vadd.f32 %v227, %v228
    %v230 = vrot.slane %v229, 1
    %v231 = vadd.f32 %v229, %v230
    %v232 = vsel %vm76, %v231, 0.0
    %v233 = vsel %vm120, %v232, 0.0
    %234 = vadd.xlane.f32.xlu0 %v233
    %v235 = vpop.xlane.xlu0 %234
    %v236 = vrot.slane %v235, 4
    %v237 = vadd.f32 %v235, %v236
    %v238 = vrot.slane %v237, 2
    %v239 = vadd.f32 %v237, %v238
    %v240 = vrot.slane %v239, 1
    %v241 = vadd.f32 %v239, %v240
    %s242 = vtos %v241
    %s243 = sadd.f32 %s197, %s242
    %vm244 = vcmp.ne.s32.totalorder %v102, 4
    %vm245 = vmand %vm76, %vm244
    %v246 = vld [vmem:[#allocation5] sm:$0xf]
    %v247 = vld [vmem:[#allocation7] sm:$0xf]
    %v248 = vsub.f32 %v246, %v247
    %v249 = vand.u32 2147483647, %v248
    %v250 = vsel %vm245, 1, 0
    %v251 = vlaneseq
    %v252 = vshrl.u32 %v251, 7
    %v253 = vsub.s32 0, %v252
    %v254 = vrot.slane %v250, %v253
    %vm255 = vcmp.eq.s32.totalorder %v254, 1
    %v256 = vsel %vm255, %v249, 0.0
    %vm257 = vcmask 125952
    %v258 = vsel %vm257, %v256, 0.0
    %259 = vadd.xlane.f32.xlu0 %v258
    %v260 = vpop.xlane.xlu0 %259
    %v261 = vrot.slane %v260, 4
    %v262 = vadd.f32 %v260, %v261
    %v263 = vrot.slane %v262, 2
    %v264 = vadd.f32 %v262, %v263
    %v265 = vrot.slane %v264, 1
    %v266 = vadd.f32 %v264, %v265
    %s267 = vtos %v266
    %v268 = vcvt.s32.f32 %v250
    %v269 = vsel %vm120, %v268, 0.0
    %270 = vadd.xlane.f32.xlu0 %v269
    %v271 = vpop.xlane.xlu0 %270
    %v272 = vrot.slane %v271, 4
    %v273 = vadd.f32 %v271, %v272
    %v274 = vrot.slane %v273, 2
    %v275 = vadd.f32 %v273, %v274
    %v276 = vrot.slane %v275, 1
    %v277 = vadd.f32 %v275, %v276
    %s278 = vtos %v277
    %vm279 = vcmp.eq.s32.totalorder %v104, 0
    %vm280 = vcmp.eq.s32.totalorder %v104, 1
    %vm281 = vcmp.eq.s32.totalorder %v104, 2
    %vm282 = vcmp.eq.s32.totalorder %v104, 3
    %v283 = vstv %s278
    %v284 = vsel %vm282, %v283, 0.0
    %v285 = vstv %s267
    %v286 = vsel %vm281, %v285, %v284
    %v287 = vstv %s243
    %v288 = vsel %vm280, %v287, %v286
    %v289 = vstv %s130
    %v290 = vsel %vm279, %v289, %v288
    %291 = vst [vmem:[#allocation10] sm:$0xff] %v290
    // Predicated region
    $region42: #{tpu_custom_call.1} parent=1 // pred_check
      _
    $region43: #{tpu_custom_call.1} parent=1 // pred_check_branch
      %293 = sbr.rel (0) target = $region45
    $region44: #{tpu_custom_call.1} parent=1 // pred_region
      %s295 = ssub.s32 128, 128
      %296 = vsyncadd [#allocation4], %s295
      %s298 = sshll.u32 [#allocation10], 4
      %s299 = int_to_ptr.vmem [resolvable:$true] %s298
      %301 = dma.vmem_to_hbm [thread:$0]  %s299, 128, %s6, [#allocation4]
    $region45: #{tpu_custom_call.1} parent=1 // pred_fallthru
      _
    // Predicated region
    $region46: #{tpu_custom_call.1} parent=1 // pred_check
      _
    $region47: #{tpu_custom_call.1} parent=1 // pred_check_branch
      %303 = sbr.rel (0) target = $region49
    $region48: #{tpu_custom_call.1} parent=1 // pred_region
      %304 = dma.done [#allocation4], 128
    $region49: #{tpu_custom_call.1} parent=1 // pred_fallthru
      _
    %305 = vsyncpa [#allocation3], 1
    %306 = vsyncpa [#allocation6], 1
    %307 = vsyncpa [#allocation9], 1
    %308 = vsyncpa [#allocation4], 1

</llo_original>
